<compile_context>
chip_gen: v7x
topology: tpu7x:2x2x1
jax: 0.10.0
libtpu: 0.0.40
codegen_flags: <defaults>
</compile_context>

<pallas_src>
import functools

import jax
import jax.numpy as jnp
from jax import lax
from jax.experimental import pallas as pl
from jax.experimental.pallas import tpu as pltpu

BOUND_INIT = 0.005
CAT_DIM = 64  # fc2 input width: (64 - actions) + actions


def critic_kernel(x_ref, a_ref,
                  w1_ref, b1_ref, ea_ref,
                  w2_ref, b2_ref,
                  w3_ref, b3_ref,
                  w4_ref, b4_ref,
                  out_ref):
    f32 = jnp.float32
    cd = w2_ref.dtype
    dn = (((1,), (1,)), ((), ()))   # contract last dim of lhs with last dim of rhs

    # fc1 (weight/bias zero-padded to 64 rows) + ReLU, batch-on-lanes output:
    #   [64, F] x [TB, F] -> [64, TB]; padded rows stay exactly 0 after ReLU.
    x = x_ref[...].astype(w1_ref.dtype)
    h1 = lax.dot_general(w1_ref[...], x, dn, preferred_element_type=f32)
    h1 = jnp.maximum(h1 + b1_ref[...], 0.0)

    # torch.cat([h1, action], dim=1): Ea is a [64, A] scatter matrix whose rows
    # h1_dim..63 are the identity, so Ea x action^T drops the action tile into
    # the (zero) padded rows of h1.  No VMEM scratch, no masked partial stores.
    a = a_ref[...].astype(ea_ref.dtype)
    cat = h1 + lax.dot_general(ea_ref[...], a, dn, preferred_element_type=f32)

    # fc2 + ReLU: one clean K=64 contraction.        [128, 64] @ [64, TB]
    h2 = jnp.dot(w2_ref[...], cat.astype(cd), preferred_element_type=f32)
    h2 = jnp.maximum(h2 + b2_ref[...], 0.0)

    # fc3 + ReLU.                                    [64, 128] @ [128, TB]
    h3 = jnp.dot(w3_ref[...], h2.astype(cd), preferred_element_type=f32)
    h3 = jnp.maximum(h3 + b3_ref[...], 0.0)

    # fc4 (out_features=1): VPU multiply + XLU sublane reduce -> dense [1, TB].
    out = jnp.sum(h3 * w4_ref[...], axis=0, keepdims=True) + b4_ref[...]
    out_ref[...] = out.astype(out_ref.dtype)


def init_params(key, features, actions):
    """nn.Linear-style init in PyTorch layout: W is [out, in], b is [out]."""
    h1 = 64 - actions
    ks = jax.random.split(key, 8)

    def lin(kw, kb, fan_in, fan_out):
        bound = 1.0 / float(fan_in) ** 0.5
        w = jax.random.uniform(kw, (fan_out, fan_in), jnp.float32, -bound, bound)
        b = jax.random.uniform(kb, (fan_out,), jnp.float32, -bound, bound)
        return w, b

    w1, b1 = lin(ks[0], ks[1], features, h1)      # fc1: features -> 64-actions
    w2, b2 = lin(ks[2], ks[3], 64, 128)           # fc2: 64 -> 128
    w3, b3 = lin(ks[4], ks[5], 128, 64)           # fc3: 128 -> 64
    w4 = jax.random.uniform(ks[6], (1, 64), jnp.float32, -BOUND_INIT, BOUND_INIT)
    b4 = jax.random.uniform(ks[7], (1,), jnp.float32, -BOUND_INIT, BOUND_INIT)
    return dict(w1=w1, b1=b1, w2=w2, b2=b2, w3=w3, b3=b3, w4=w4, b4=b4)


def _prepare_params(p, compute_dtype):
    """Kernel-layout params (PyTorch [out,in] weights, column biases in f32)."""
    h1_dim, features = p["w1"].shape
    actions = CAT_DIM - h1_dim
    w1p = jnp.zeros((CAT_DIM, features), compute_dtype).at[:h1_dim].set(
        p["w1"].astype(compute_dtype))
    b1p = jnp.zeros((CAT_DIM, 1), jnp.float32).at[:h1_dim, 0].set(p["b1"])
    # Scatter matrix that places the action tile into concat rows h1_dim..63.
    ea = jnp.zeros((CAT_DIM, actions), compute_dtype).at[h1_dim:, :].set(
        jnp.eye(actions, dtype=compute_dtype))
    return (w1p, b1p, ea,
            p["w2"].astype(compute_dtype), p["b2"].reshape(-1, 1),
            p["w3"].astype(compute_dtype), p["b3"].reshape(-1, 1),
            p["w4"].reshape(-1, 1),        # [64, 1] column (== fc4.weight.T)
            p["b4"].reshape(1, 1))


@functools.partial(jax.jit, static_argnames=("tb", "compute_dtype"))
def critic_forward(x, action, params, *, tb=512, compute_dtype=jnp.bfloat16):
    """Critic forward.  Returns the lane-dense flat [B] Q-values (reshape to
    [B, 1] at the call site if the exact torch layout is needed)."""
    B, features = x.shape
    actions = action.shape[1]
    h1_dim = CAT_DIM - actions
    assert params["w1"].shape == (h1_dim, features)

    # --- batch-tile selection (batch lives on the lane axis of the output) --
    tb = max(128, (int(tb) // 128) * 128)
    b_aligned = ((B + 127) // 128) * 128
    if b_aligned >= 256:
        # v7x: keep >=2 grid steps so "parallel" puts work on both TensorCores.
        tb = min(tb, max(128, (b_aligned // 2 // 128) * 128))
    if B <= tb:
        tb = B                      # single full-array tile (any B, no padding)
    num_tiles = pl.cdiv(B, tb)

    args = _prepare_params(params, compute_dtype)

    def tiled_rows(shape):          # x / action: native [B, F] layout, tile rows
        return pl.BlockSpec(shape, lambda j: (j, 0))

    def resident(shape):            # weights / biases: DMA'd once, stay in VMEM
        return pl.BlockSpec(shape, lambda j: (0, 0))

    grid_spec = pltpu.PrefetchScalarGridSpec(
        num_scalar_prefetch=0,
        grid=(num_tiles,),
        in_specs=[
            tiled_rows((tb, features)),       # x
            tiled_rows((tb, actions)),        # action
            resident((CAT_DIM, features)),    # w1 (zero-padded to 64 rows)
            resident((CAT_DIM, 1)),           # b1 (zero-padded)
            resident((CAT_DIM, actions)),     # Ea scatter matrix
            resident((128, CAT_DIM)),         # w2
            resident((128, 1)),               # b2
            resident((64, 128)),              # w3
            resident((64, 1)),                # b3
            resident((64, 1)),                # w4 column
            resident((1, 1)),                 # b4
        ],
        out_specs=pl.BlockSpec((1, tb), lambda j: (0, j)),
    )

    out = pl.pallas_call(
        critic_kernel,
        out_shape=jax.ShapeDtypeStruct((1, B), jnp.float32),
        grid_spec=grid_spec,
        compiler_params=pltpu.CompilerParams(
            dimension_semantics=("parallel",)),
    )(x, action, *args)

    return out.reshape(B)


def reference_forward(x, action, params):
    """Pure-JAX reference in the original (torch) layout / math order."""
    hp = lax.Precision.HIGHEST
    h1 = jax.nn.relu(jnp.dot(x, params["w1"].T, precision=hp) + params["b1"])
    cat = jnp.concatenate([h1, action], axis=1)
    h2 = jax.nn.relu(jnp.dot(cat, params["w2"].T, precision=hp) + params["b2"])
    h3 = jax.nn.relu(jnp.dot(h2, params["w3"].T, precision=hp) + params["b3"])
    return jnp.dot(h3, params["w4"].T, precision=hp) + params["b4"]


if __name__ == "__main__":
    features, actions = 16, 4
    key = jax.random.PRNGKey(0)
    kp, kx, ka, kx2, ka2 = jax.random.split(key, 5)

    params = init_params(kp, features, actions)

    # Small batch (module-scale sanity check), strict f32 path.
    B = 2
    x = jax.random.normal(kx, (B, features), jnp.float32)
    a = jax.random.normal(ka, (B, actions), jnp.float32)
    ref = reference_forward(x, a, params)
    out_f32 = critic_forward(x, a, params, compute_dtype=jnp.float32)
    jax.block_until_ready(out_f32)
    assert out_f32.shape == (B,)
    assert jnp.allclose(out_f32, ref[:, 0], atol=2e-4, rtol=1e-3), (out_f32, ref)

    # Default (bf16 MXU operands, f32 accumulation) path — relaxed tolerance.
    out_bf = critic_forward(x, a, params)
    jax.block_until_ready(out_bf)
    assert out_bf.shape == (B,)
    assert bool(jnp.all(jnp.isfinite(out_bf)))
    assert jnp.allclose(out_bf, ref[:, 0], atol=1e-3, rtol=1e-2)

    # Larger, non-tile-aligned batch: exercises the grid + ragged last tile
    # (no explicit padding — garbage lanes stay per-column and are clipped).
    B2 = 300
    x2 = jax.random.normal(kx2, (B2, features), jnp.float32)
    a2 = jax.random.normal(ka2, (B2, actions), jnp.float32)
    ref2 = reference_forward(x2, a2, params)

    out2_f32 = critic_forward(x2, a2, params, compute_dtype=jnp.float32)
    jax.block_until_ready(out2_f32)
    assert out2_f32.shape == (B2,)
    assert jnp.allclose(out2_f32, ref2[:, 0], atol=2e-4, rtol=1e-3)

    out2_bf = critic_forward(x2, a2, params)
    jax.block_until_ready(out2_bf)
    assert out2_bf.shape == (B2,)
    assert bool(jnp.all(jnp.isfinite(out2_bf)))
    assert jnp.allclose(out2_bf, ref2[:, 0], atol=1e-3, rtol=1e-2)

    # TODO(synk): train_model (AdamW + MSELoss backward), soft_update_parameters
    # and change_gradient_mode are training-time utilities outside the forward
    # pass and are not implemented as kernels.

    print("KERNEL_OK")
</pallas_src>

<mosaic_0001>
module attributes {stable_mosaic.version = 11 : i64} {
  func.func @critic_kernel(%arg0: i32, %arg1: memref<2x16xf32, #tpu.memory_space<vmem>>, %arg2: memref<2x4xf32, #tpu.memory_space<vmem>>, %arg3: memref<64x16xf32, #tpu.memory_space<vmem>>, %arg4: memref<64x1xf32, #tpu.memory_space<vmem>>, %arg5: memref<64x4xf32, #tpu.memory_space<vmem>>, %arg6: memref<128x64xf32, #tpu.memory_space<vmem>>, %arg7: memref<128x1xf32, #tpu.memory_space<vmem>>, %arg8: memref<64x128xf32, #tpu.memory_space<vmem>>, %arg9: memref<64x1xf32, #tpu.memory_space<vmem>>, %arg10: memref<64x1xf32, #tpu.memory_space<vmem>>, %arg11: memref<1x1xf32, #tpu.memory_space<vmem>>, %arg12: memref<1x2xf32, #tpu.memory_space<vmem>>) attributes {dimension_semantics = [#tpu.dimension_semantics<parallel>], iteration_bounds = array<i64: 1>, scalar_prefetch = 0 : i64, scratch_operands = 0 : i64, tpu.core_type = #tpu.core_type<tc>, window_params = [{transform_indices = @transform_0, window_bounds = array<i64: 2, 16>}, {transform_indices = @transform_1, window_bounds = array<i64: 2, 4>}, {pipeline_mode = #tpu.pipeline_mode<synchronous>, transform_indices = @transform_2, window_bounds = array<i64: 64, 16>}, {pipeline_mode = #tpu.pipeline_mode<synchronous>, transform_indices = @transform_3, window_bounds = array<i64: 64, 1>}, {pipeline_mode = #tpu.pipeline_mode<synchronous>, transform_indices = @transform_4, window_bounds = array<i64: 64, 4>}, {pipeline_mode = #tpu.pipeline_mode<synchronous>, transform_indices = @transform_5, window_bounds = array<i64: 128, 64>}, {pipeline_mode = #tpu.pipeline_mode<synchronous>, transform_indices = @transform_6, window_bounds = array<i64: 128, 1>}, {pipeline_mode = #tpu.pipeline_mode<synchronous>, transform_indices = @transform_7, window_bounds = array<i64: 64, 128>}, {pipeline_mode = #tpu.pipeline_mode<synchronous>, transform_indices = @transform_8, window_bounds = array<i64: 64, 1>}, {pipeline_mode = #tpu.pipeline_mode<synchronous>, transform_indices = @transform_9, window_bounds = array<i64: 64, 1>}, {pipeline_mode = #tpu.pipeline_mode<synchronous>, transform_indices = @transform_10, window_bounds = array<i64: 1, 1>}, {transform_indices = @transform_11, window_bounds = array<i64: 1, 2>}]} {
    %c0 = arith.constant 0 : index
    %c0_0 = arith.constant 0 : index
    %0 = vector.load %arg1[%c0, %c0_0] : memref<2x16xf32, #tpu.memory_space<vmem>>, vector<2x16xf32>
    %c0_1 = arith.constant 0 : index
    %c0_2 = arith.constant 0 : index
    %1 = vector.load %arg3[%c0_1, %c0_2] : memref<64x16xf32, #tpu.memory_space<vmem>>, vector<64x16xf32>
    %cst = arith.constant dense<0.000000e+00> : vector<64x2xf32>
    %2 = tpu.matmul %1, %0, %cst {dimension_numbers = #tpu.dot_dimension_numbers<[1], [1], [0], [0], [0, 0, 1, 0], [], []>} : vector<64x16xf32>, vector<2x16xf32>, vector<64x2xf32> -> vector<64x2xf32>
    %c0_3 = arith.constant 0 : index
    %c0_4 = arith.constant 0 : index
    %3 = vector.load %arg4[%c0_3, %c0_4] : memref<64x1xf32, #tpu.memory_space<vmem>>, vector<64x1xf32>
    %4 = vector.broadcast %3 : vector<64x1xf32> to vector<64x2xf32>
    %5 = arith.addf %2, %4 : vector<64x2xf32>
    %cst_5 = arith.constant 0.000000e+00 : f32
    %6 = vector.broadcast %cst_5 : f32 to vector<64x2xf32>
    %7 = arith.maximumf %5, %6 : vector<64x2xf32>
    %c0_6 = arith.constant 0 : index
    %c0_7 = arith.constant 0 : index
    %8 = vector.load %arg2[%c0_6, %c0_7] : memref<2x4xf32, #tpu.memory_space<vmem>>, vector<2x4xf32>
    %c0_8 = arith.constant 0 : index
    %c0_9 = arith.constant 0 : index
    %9 = vector.load %arg5[%c0_8, %c0_9] : memref<64x4xf32, #tpu.memory_space<vmem>>, vector<64x4xf32>
    %cst_10 = arith.constant dense<0.000000e+00> : vector<64x2xf32>
    %10 = tpu.matmul %9, %8, %cst_10 {dimension_numbers = #tpu.dot_dimension_numbers<[1], [1], [0], [0], [0, 0, 1, 0], [], []>} : vector<64x4xf32>, vector<2x4xf32>, vector<64x2xf32> -> vector<64x2xf32>
    %11 = arith.addf %7, %10 : vector<64x2xf32>
    %c0_11 = arith.constant 0 : index
    %c0_12 = arith.constant 0 : index
    %12 = vector.load %arg6[%c0_11, %c0_12] : memref<128x64xf32, #tpu.memory_space<vmem>>, vector<128x64xf32>
    %cst_13 = arith.constant dense<0.000000e+00> : vector<128x2xf32>
    %13 = tpu.matmul %12, %11, %cst_13 {dimension_numbers = #tpu.dot_dimension_numbers<[1], [0], [0], [1], [0, 0, 1, 1], [], []>} : vector<128x64xf32>, vector<64x2xf32>, vector<128x2xf32> -> vector<128x2xf32>
    %c0_14 = arith.constant 0 : index
    %c0_15 = arith.constant 0 : index
    %14 = vector.load %arg7[%c0_14, %c0_15] : memref<128x1xf32, #tpu.memory_space<vmem>>, vector<128x1xf32>
    %15 = vector.broadcast %14 : vector<128x1xf32> to vector<128x2xf32>
    %16 = arith.addf %13, %15 : vector<128x2xf32>
    %cst_16 = arith.constant 0.000000e+00 : f32
    %17 = vector.broadcast %cst_16 : f32 to vector<128x2xf32>
    %18 = arith.maximumf %16, %17 : vector<128x2xf32>
    %c0_17 = arith.constant 0 : index
    %c0_18 = arith.constant 0 : index
    %19 = vector.load %arg8[%c0_17, %c0_18] : memref<64x128xf32, #tpu.memory_space<vmem>>, vector<64x128xf32>
    %cst_19 = arith.constant dense<0.000000e+00> : vector<64x2xf32>
    %20 = tpu.matmul %19, %18, %cst_19 {dimension_numbers = #tpu.dot_dimension_numbers<[1], [0], [0], [1], [0, 0, 1, 1], [], []>} : vector<64x128xf32>, vector<128x2xf32>, vector<64x2xf32> -> vector<64x2xf32>
    %c0_20 = arith.constant 0 : index
    %c0_21 = arith.constant 0 : index
    %21 = vector.load %arg9[%c0_20, %c0_21] : memref<64x1xf32, #tpu.memory_space<vmem>>, vector<64x1xf32>
    %22 = vector.broadcast %21 : vector<64x1xf32> to vector<64x2xf32>
    %23 = arith.addf %20, %22 : vector<64x2xf32>
    %cst_22 = arith.constant 0.000000e+00 : f32
    %24 = vector.broadcast %cst_22 : f32 to vector<64x2xf32>
    %25 = arith.maximumf %23, %24 : vector<64x2xf32>
    %c0_23 = arith.constant 0 : index
    %c0_24 = arith.constant 0 : index
    %26 = vector.load %arg10[%c0_23, %c0_24] : memref<64x1xf32, #tpu.memory_space<vmem>>, vector<64x1xf32>
    %27 = vector.broadcast %26 : vector<64x1xf32> to vector<64x2xf32>
    %28 = arith.mulf %25, %27 : vector<64x2xf32>
    %cst_25 = arith.constant dense<0.000000e+00> : vector<2xf32>
    %29 = vector.multi_reduction <add>, %28, %cst_25 [0] : vector<64x2xf32> to vector<2xf32>
    %30 = vector.shape_cast %29 : vector<2xf32> to vector<1x2xf32>
    %c0_26 = arith.constant 0 : index
    %c0_27 = arith.constant 0 : index
    %31 = vector.load %arg11[%c0_26, %c0_27] : memref<1x1xf32, #tpu.memory_space<vmem>>, vector<1x1xf32>
    %32 = vector.broadcast %31 : vector<1x1xf32> to vector<1x2xf32>
    %33 = arith.addf %30, %32 : vector<1x2xf32>
    %c0_28 = arith.constant 0 : index
    %c0_29 = arith.constant 0 : index
    %34 = vector.load %arg12[%c0_28, %c0_29] : memref<1x2xf32, #tpu.memory_space<vmem>>, vector<1x2xf32>
    tpu.vector_store %arg12[%c0_28, %c0_29], %33 {strides = array<i32>} : memref<1x2xf32, #tpu.memory_space<vmem>>, vector<1x2xf32>,
    return
  }
  func.func @transform_0(%arg0: i32) -> (i32, i32) {
    %c0_i32 = arith.constant 0 : i32
    %c0_i32_0 = arith.constant 0 : i32
    return %arg0, %c0_i32 : i32, i32
  }
  func.func @transform_1(%arg0: i32) -> (i32, i32) {
    %c0_i32 = arith.constant 0 : i32
    %c0_i32_0 = arith.constant 0 : i32
    return %arg0, %c0_i32 : i32, i32
  }
  func.func @transform_2(%arg0: i32) -> (i32, i32) {
    %c0_i32 = arith.constant 0 : i32
    %c0_i32_0 = arith.constant 0 : i32
    %c0_i32_1 = arith.constant 0 : i32
    return %c0_i32, %c0_i32_0 : i32, i32
  }
  func.func @transform_3(%arg0: i32) -> (i32, i32) {
    %c0_i32 = arith.constant 0 : i32
    %c0_i32_0 = arith.constant 0 : i32
    %c0_i32_1 = arith.constant 0 : i32
    return %c0_i32, %c0_i32_0 : i32, i32
  }
  func.func @transform_4(%arg0: i32) -> (i32, i32) {
    %c0_i32 = arith.constant 0 : i32
    %c0_i32_0 = arith.constant 0 : i32
    %c0_i32_1 = arith.constant 0 : i32
    return %c0_i32, %c0_i32_0 : i32, i32
  }
  func.func @transform_5(%arg0: i32) -> (i32, i32) {
    %c0_i32 = arith.constant 0 : i32
    %c0_i32_0 = arith.constant 0 : i32
    %c0_i32_1 = arith.constant 0 : i32
    return %c0_i32, %c0_i32_0 : i32, i32
  }
  func.func @transform_6(%arg0: i32) -> (i32, i32) {
    %c0_i32 = arith.constant 0 : i32
    %c0_i32_0 = arith.constant 0 : i32
    %c0_i32_1 = arith.constant 0 : i32
    return %c0_i32, %c0_i32_0 : i32, i32
  }
  func.func @transform_7(%arg0: i32) -> (i32, i32) {
    %c0_i32 = arith.constant 0 : i32
    %c0_i32_0 = arith.constant 0 : i32
    %c0_i32_1 = arith.constant 0 : i32
    return %c0_i32, %c0_i32_0 : i32, i32
  }
  func.func @transform_8(%arg0: i32) -> (i32, i32) {
    %c0_i32 = arith.constant 0 : i32
    %c0_i32_0 = arith.constant 0 : i32
    %c0_i32_1 = arith.constant 0 : i32
    return %c0_i32, %c0_i32_0 : i32, i32
  }
  func.func @transform_9(%arg0: i32) -> (i32, i32) {
    %c0_i32 = arith.constant 0 : i32
    %c0_i32_0 = arith.constant 0 : i32
    %c0_i32_1 = arith.constant 0 : i32
    return %c0_i32, %c0_i32_0 : i32, i32
  }
  func.func @transform_10(%arg0: i32) -> (i32, i32) {
    %c0_i32 = arith.constant 0 : i32
    %c0_i32_0 = arith.constant 0 : i32
    %c0_i32_1 = arith.constant 0 : i32
    return %c0_i32, %c0_i32_0 : i32, i32
  }
  func.func @transform_11(%arg0: i32) -> (i32, i32) {
    %c0_i32 = arith.constant 0 : i32
    %c0_i32_0 = arith.constant 0 : i32
    return %c0_i32, %arg0 : i32, i32
  }
}

</mosaic_0001>

<llo_original>
// kernel: critic_forward.1
$region0: #{critic_forward.1}
  #allocation0 [shape = 'u32[]', space=smem, size = 0x4, offset = 0x4, fixed_abs, tag = 'smem constant byte address 0x4 - core index']
  #allocation1 [shape = 'u32[144,128]{1,0:T(1,128)}', space=vmem, size = 0x12000, scoped, tag = 'internal scratch']
  #allocation2 [shape = 'f32[1,1]{1,0:T(1,128)S(1)}', space=vmem, size = 0x200, scoped, tag = 'scoped memory for critic_forward.1']
  %s0 = inlined_call_operand.vmem [shape: f32[2,16], index: 0, kind: input, shape index: {}]
  %s1 = inlined_call_operand.vmem [shape: f32[2,4], index: 1, kind: input, shape index: {}]
  %s2 = inlined_call_operand.vmem [shape: f32[64,16], index: 2, kind: input, shape index: {}]
  %s3 = inlined_call_operand.vmem [shape: f32[64,1], index: 3, kind: input, shape index: {}]
  %s4 = inlined_call_operand.vmem [shape: f32[64,4], index: 4, kind: input, shape index: {}]
  %s5 = inlined_call_operand.vmem [shape: f32[128,64], index: 5, kind: input, shape index: {}]
  %s6 = inlined_call_operand.vmem [shape: f32[128,1], index: 6, kind: input, shape index: {}]
  %s7 = inlined_call_operand.vmem [shape: f32[64,128], index: 7, kind: input, shape index: {}]
  %s8 = inlined_call_operand.vmem [shape: f32[64,1], index: 8, kind: input, shape index: {}]
  %s9 = inlined_call_operand.vmem [shape: f32[64,1], index: 9, kind: input, shape index: {}]
  %s10 = inlined_call_operand.<no memory space> [shape: f32[1,1], index: 10, kind: input, shape index: {}]
  %s11 = inlined_call_operand.hbm [shape: f32[1,2], index: 11, kind: output, shape index: {}]
  %s12 = sld [smem:[#allocation0]]
  $region54: #{critic_forward.1} parent=0
    _
  %s14 = ssub.s32 1, %s12
  %s15 = scalar_select 0, %s14, %s12
  %v16 = vstv %s10
  %17 = vst [vmem:[#allocation2] sm:$0x1] %v16
  $region1: #{critic_forward.1} parent=0
    #allocation3 [shape = 'u8[512]{0}', space=vmem, size = 0x400, scoped, tag = 'output window, operand 0, single buffered']
    #allocation4 [shape = 's32[1]{0}', space=sflag, size = 0x4, scoped, tag = 'scoped memory for critic_forward.1']
    %18 = vsyncpa [#allocation4], 0
    // Predicated region
    $region2: #{critic_forward.1} parent=1 // pred_check
      _
    $region3: #{critic_forward.1} parent=1 // pred_check_branch
      %20 = sbr.rel (0) target = $region5
    $region4: #{critic_forward.1} parent=1 // pred_region
      _
    $region5: #{critic_forward.1} parent=1 // pred_fallthru
      _
    // Predicated region
    $region6: #{critic_forward.1} parent=1 // pred_check
      _
    $region7: #{critic_forward.1} parent=1 // pred_check_branch
      %22 = sbr.rel (0) target = $region9
    $region8: #{critic_forward.1} parent=1 // pred_region
      _
    $region9: #{critic_forward.1} parent=1 // pred_fallthru
      _
    // Predicated region
    $region10: #{critic_forward.1} parent=1 // pred_check
      _
    $region11: #{critic_forward.1} parent=1 // pred_check_branch
      %24 = sbr.rel (0) target = $region13
    $region12: #{critic_forward.1} parent=1 // pred_region
      _
    $region13: #{critic_forward.1} parent=1 // pred_fallthru
      _
    // Predicated region
    $region14: #{critic_forward.1} parent=1 // pred_check
      _
    $region15: #{critic_forward.1} parent=1 // pred_check_branch
      %26 = sbr.rel (0) target = $region17
    $region16: #{critic_forward.1} parent=1 // pred_region
      _
    $region17: #{critic_forward.1} parent=1 // pred_fallthru
      _
    // Predicated region
    $region18: #{critic_forward.1} parent=1 // pred_check
      _
    $region19: #{critic_forward.1} parent=1 // pred_check_branch
      %28 = sbr.rel (0) target = $region21
    $region20: #{critic_forward.1} parent=1 // pred_region
      _
    $region21: #{critic_forward.1} parent=1 // pred_fallthru
      _
    // Predicated region
    $region22: #{critic_forward.1} parent=1 // pred_check
      _
    $region23: #{critic_forward.1} parent=1 // pred_check_branch
      %30 = sbr.rel (0) target = $region25
    $region24: #{critic_forward.1} parent=1 // pred_region
      _
    $region25: #{critic_forward.1} parent=1 // pred_fallthru
      _
    // Predicated region
    $region26: #{critic_forward.1} parent=1 // pred_check
      _
    $region27: #{critic_forward.1} parent=1 // pred_check_branch
      %32 = sbr.rel (0) target = $region29
    $region28: #{critic_forward.1} parent=1 // pred_region
      _
    $region29: #{critic_forward.1} parent=1 // pred_fallthru
      _
    // Predicated region
    $region30: #{critic_forward.1} parent=1 // pred_check
      _
    $region31: #{critic_forward.1} parent=1 // pred_check_branch
      %34 = sbr.rel (0) target = $region33
    $region32: #{critic_forward.1} parent=1 // pred_region
      _
    $region33: #{critic_forward.1} parent=1 // pred_fallthru
      _
    // Predicated region
    $region34: #{critic_forward.1} parent=1 // pred_check
      _
    $region35: #{critic_forward.1} parent=1 // pred_check_branch
      %36 = sbr.rel (0) target = $region37
    $region36: #{critic_forward.1} parent=1 // pred_region
      _
    $region37: #{critic_forward.1} parent=1 // pred_fallthru
      _
    // Predicated region
    $region38: #{critic_forward.1} parent=1 // pred_check
      _
    $region39: #{critic_forward.1} parent=1 // pred_check_branch
      %38 = sbr.rel (0) target = $region41
    $region40: #{critic_forward.1} parent=1 // pred_region
      _
    $region41: #{critic_forward.1} parent=1 // pred_fallthru
      _
    // Predicated region
    $region42: #{critic_forward.1} parent=1 // pred_check
      _
    $region43: #{critic_forward.1} parent=1 // pred_check_branch
      %40 = sbr.rel (0) target = $region45
    $region44: #{critic_forward.1} parent=1 // pred_region
      _
    $region45: #{critic_forward.1} parent=1 // pred_fallthru
      _
    %v41 = vld [vmem:[%s0] sm:$0x3]
    %v42 = vld [vmem:[%s2] sm:$0xff]
    %v43 = vld [vmem:[%s2 + $0x8] sm:$0xff]
    %v44 = vld [vmem:[%s2 + $0x10] sm:$0xff]
    %v45 = vld [vmem:[%s2 + $0x18] sm:$0xff]
    %v46 = vld [vmem:[%s2 + $0x20] sm:$0xff]
    %v47 = vld [vmem:[%s2 + $0x28] sm:$0xff]
    %v48 = vld [vmem:[%s2 + $0x30] sm:$0xff]
    %v49 = vld [vmem:[%s2 + $0x38] sm:$0xff]
    %v50 = vld [vmem:[%s3] sm:$0xff]
    %v51 = vld [vmem:[%s3 + $0x8] sm:$0xff]
    %v52 = vld [vmem:[%s3 + $0x10] sm:$0xff]
    %v53 = vld [vmem:[%s3 + $0x18] sm:$0xff]
    %v54 = vld [vmem:[%s3 + $0x20] sm:$0xff]
    %v55 = vld [vmem:[%s3 + $0x28] sm:$0xff]
    %v56 = vld [vmem:[%s3 + $0x30] sm:$0xff]
    %v57 = vld [vmem:[%s3 + $0x38] sm:$0xff]
    %59 = vset.pattern.permute.xlu0 0
    %60 = vperm.xlu0 %59, %v50
    %v61 = vpop.permute.xlu0 %60
    %64 = vset.pattern.permute.xlu0 0
    %65 = vperm.xlu0 %64, %v51
    %v66 = vpop.permute.xlu0 %65
    %69 = vset.pattern.permute.xlu0 0
    %70 = vperm.xlu0 %69, %v52
    %v71 = vpop.permute.xlu0 %70
    %74 = vset.pattern.permute.xlu0 0
    %75 = vperm.xlu0 %74, %v53
    %v76 = vpop.permute.xlu0 %75
    %79 = vset.pattern.permute.xlu0 0
    %80 = vperm.xlu0 %79, %v54
    %v81 = vpop.permute.xlu0 %80
    %84 = vset.pattern.permute.xlu0 0
    %85 = vperm.xlu0 %84, %v55
    %v86 = vpop.permute.xlu0 %85
    %89 = vset.pattern.permute.xlu0 0
    %90 = vperm.xlu0 %89, %v56
    %v91 = vpop.permute.xlu0 %90
    %94 = vset.pattern.permute.xlu0 0
    %95 = vperm.xlu0 %94, %v57
    %v96 = vpop.permute.xlu0 %95
    %vm98 = vcmask 130048
    %v100 = vsel %vm98, %v42, 0
    %v103 = vsel %vm98, %v43, 0
    %v106 = vsel %vm98, %v44, 0
    %v109 = vsel %vm98, %v45, 0
    %v112 = vsel %vm98, %v46, 0
    %v115 = vsel %vm98, %v47, 0
    %v118 = vsel %vm98, %v48, 0
    %v121 = vsel %vm98, %v49, 0
    %v124 = vsel %vm98, %v41, 0
    %126 = vmatprep.subr.mxu0 0.0
    %127 = vmatpush1.xpose.msra.mxu0 %v124
    %128 = vmatprep.subr.mxu0 0.0
    %129 = vmatpush1.xpose.msra.mxu0 0.0
    %130 = vmatprep.subr.mxu0 0.0
    %131 = vmatpush1.xpose.msra.mxu0 0.0
    %132 = vmatprep.subr.mxu0 0.0
    %133 = vmatpush1.xpose.msra.mxu0 0.0
    %134 = vmatprep.subr.mxu0 0.0
    %135 = vmatpush1.xpose.msra.mxu0 0.0
    %136 = vmatprep.subr.mxu0 0.0
    %137 = vmatpush1.xpose.msra.mxu0 0.0
    %138 = vmatprep.subr.mxu0 0.0
    %139 = vmatpush1.xpose.msra.mxu0 0.0
    %140 = vmatprep.subr.mxu0 0.0
    %141 = vmatpush1.xpose.msra.mxu0 0.0
    %142 = vmatprep.subr.mxu0 0.0
    %143 = vmatpush1.xpose.msra.mxu0 0.0
    %144 = vmatprep.subr.mxu0 0.0
    %145 = vmatpush1.xpose.msra.mxu0 0.0
    %146 = vmatprep.subr.mxu0 0.0
    %147 = vmatpush1.xpose.msra.mxu0 0.0
    %148 = vmatprep.subr.mxu0 0.0
    %149 = vmatpush1.xpose.msra.mxu0 0.0
    %150 = vmatprep.subr.mxu0 0.0
    %151 = vmatpush1.xpose.msra.mxu0 0.0
    %152 = vmatprep.subr.mxu0 0.0
    %153 = vmatpush1.xpose.msra.mxu0 0.0
    %154 = vmatprep.subr.mxu0 0.0
    %155 = vmatpush1.xpose.msra.mxu0 0.0
    %156 = vmatprep.subr.mxu0 0.0
    %157 = vmatpush1.xpose.msra.mxu0 0.0
    %158 = vmatprep.subr.mxu0 0.0
    %159 = vmatpush1.xpose.msra.mxu0 0.0
    %160 = vmatprep.subr.mxu0 0.0
    %161 = vmatpush1.xpose.msra.mxu0 0.0
    %162 = vmatprep.subr.mxu0 0.0
    %163 = vmatpush1.xpose.msra.mxu0 0.0
    %164 = vmatprep.subr.mxu0 0.0
    %165 = vmatpush1.xpose.msra.mxu0 0.0
    %166 = vmatprep.subr.mxu0 0.0
    %167 = vmatpush1.xpose.msra.mxu0 0.0
    %168 = vmatprep.subr.mxu0 0.0
    %169 = vmatpush1.xpose.msra.mxu0 0.0
    %170 = vmatprep.subr.mxu0 0.0
    %171 = vmatpush1.xpose.msra.mxu0 0.0
    %172 = vmatprep.subr.mxu0 0.0
    %173 = vmatpush1.xpose.msra.mxu0 0.0
    %174 = vmatprep.subr.mxu0 0.0
    %175 = vmatpush1.xpose.msra.mxu0 0.0
    %176 = vmatprep.subr.mxu0 0.0
    %177 = vmatpush1.xpose.msra.mxu0 0.0
    %178 = vmatprep.subr.mxu0 0.0
    %179 = vmatpush1.xpose.msra.mxu0 0.0
    %180 = vmatprep.subr.mxu0 0.0
    %181 = vmatpush1.xpose.msra.mxu0 0.0
    %182 = vmatprep.subr.mxu0 0.0
    %183 = vmatpush1.xpose.msra.mxu0 0.0
    %184 = vmatprep.subr.mxu0 0.0
    %185 = vmatpush1.xpose.msra.mxu0 0.0
    %186 = vmatprep.subr.mxu0 0.0
    %187 = vmatpush1.xpose.msra.mxu0 0.0
    %188 = vmatprep.subr.mxu0 0.0
    %189 = vmatpush1.xpose.msra.mxu0 0.0
    %190 = vmatprep.mubr.f32.mxu0 0.0
    %191 = vmatmul.mubr.f32.gmra.mrb[0].mxu0 %v100
    %v192 = vpop.f32.mrb[0].mxu0
    %v193 = vadd.f32 %v61, %v192
    %v194 = vpop.f32.mrb[0].mxu0
    %195 = vmatprep.mubr.f32.mxu0 0.0
    %196 = vmatmul.mubr.f32.gmra.mrb[0].mxu0 %v103
    %v197 = vpop.f32.mrb[0].mxu0
    %v198 = vadd.f32 %v66, %v197
    %v199 = vpop.f32.mrb[0].mxu0
    %200 = vmatprep.mubr.f32.mxu0 0.0
    %201 = vmatmul.mubr.f32.gmra.mrb[0].mxu0 %v106
    %v202 = vpop.f32.mrb[0].mxu0
    %v203 = vadd.f32 %v71, %v202
    %v204 = vpop.f32.mrb[0].mxu0
    %205 = vmatprep.mubr.f32.mxu0 0.0
    %206 = vmatmul.mubr.f32.gmra.mrb[0].mxu0 %v109
    %v207 = vpop.f32.mrb[0].mxu0
    %v208 = vadd.f32 %v76, %v207
    %v209 = vpop.f32.mrb[0].mxu0
    %210 = vmatprep.mubr.f32.mxu0 0.0
    %211 = vmatmul.mubr.f32.gmra.mrb[0].mxu0 %v112
    %v212 = vpop.f32.mrb[0].mxu0
    %v213 = vadd.f32 %v81, %v212
    %v214 = vpop.f32.mrb[0].mxu0
    %215 = vmatprep.mubr.f32.mxu0 0.0
    %216 = vmatmul.mubr.f32.gmra.mrb[0].mxu0 %v115
    %v217 = vpop.f32.mrb[0].mxu0
    %v218 = vadd.f32 %v86, %v217
    %v219 = vpop.f32.mrb[0].mxu0
    %220 = vmatprep.mubr.f32.mxu0 0.0
    %221 = vmatmul.mubr.f32.gmra.mrb[0].mxu0 %v118
    %v222 = vpop.f32.mrb[0].mxu0
    %v223 = vadd.f32 %v91, %v222
    %v224 = vpop.f32.mrb[0].mxu0
    %225 = vmatprep.mubr.f32.mxu0 0.0
    %226 = vmatmul.mubr.f32.gmra.mrb[0].mxu0 %v121
    %v227 = vpop.f32.mrb[0].mxu0
    %v228 = vadd.f32 %v96, %v227
    %v229 = vpop.f32.mrb[0].mxu0
    %230 = vdwg.mxu0
    %v231 = vmax.f32 %v193, 0.0
    %v232 = vmax.f32 %v198, 0.0
    %v233 = vmax.f32 %v203, 0.0
    %v234 = vmax.f32 %v208, 0.0
    %v235 = vmax.f32 %v213, 0.0
    %v236 = vmax.f32 %v218, 0.0
    %v237 = vmax.f32 %v223, 0.0
    %v238 = vmax.f32 %v228, 0.0
    %v239 = vld [vmem:[%s1] sm:$0x3]
    %v240 = vld [vmem:[%s4] sm:$0xff]
    %v241 = vld [vmem:[%s4 + $0x8] sm:$0xff]
    %v242 = vld [vmem:[%s4 + $0x10] sm:$0xff]
    %v243 = vld [vmem:[%s4 + $0x18] sm:$0xff]
    %v244 = vld [vmem:[%s4 + $0x20] sm:$0xff]
    %v245 = vld [vmem:[%s4 + $0x28] sm:$0xff]
    %v246 = vld [vmem:[%s4 + $0x30] sm:$0xff]
    %v247 = vld [vmem:[%s4 + $0x38] sm:$0xff]
    %vm248 = vcmask 31744
    %v250 = vsel %vm248, %v240, 0
    %v253 = vsel %vm248, %v241, 0
    %v256 = vsel %vm248, %v242, 0
    %v259 = vsel %vm248, %v243, 0
    %v262 = vsel %vm248, %v244, 0
    %v265 = vsel %vm248, %v245, 0
    %v268 = vsel %vm248, %v246, 0
    %v271 = vsel %vm248, %v247, 0
    %v274 = vsel %vm248, %v239, 0
    %276 = vmatprep.subr.mxu0 0.0
    %277 = vmatpush1.xpose.msra.mxu0 %v274
    %278 = vmatprep.subr.mxu0 0.0
    %279 = vmatpush1.xpose.msra.mxu0 0.0
    %280 = vmatprep.subr.mxu0 0.0
    %281 = vmatpush1.xpose.msra.mxu0 0.0
    %282 = vmatprep.subr.mxu0 0.0
    %283 = vmatpush1.xpose.msra.mxu0 0.0
    %284 = vmatprep.subr.mxu0 0.0
    %285 = vmatpush1.xpose.msra.mxu0 0.0
    %286 = vmatprep.subr.mxu0 0.0
    %287 = vmatpush1.xpose.msra.mxu0 0.0
    %288 = vmatprep.subr.mxu0 0.0
    %289 = vmatpush1.xpose.msra.mxu0 0.0
    %290 = vmatprep.subr.mxu0 0.0
    %291 = vmatpush1.xpose.msra.mxu0 0.0
    %292 = vmatprep.subr.mxu0 0.0
    %293 = vmatpush1.xpose.msra.mxu0 0.0
    %294 = vmatprep.subr.mxu0 0.0
    %295 = vmatpush1.xpose.msra.mxu0 0.0
    %296 = vmatprep.subr.mxu0 0.0
    %297 = vmatpush1.xpose.msra.mxu0 0.0
    %298 = vmatprep.subr.mxu0 0.0
    %299 = vmatpush1.xpose.msra.mxu0 0.0
    %300 = vmatprep.subr.mxu0 0.0
    %301 = vmatpush1.xpose.msra.mxu0 0.0
    %302 = vmatprep.subr.mxu0 0.0
    %303 = vmatpush1.xpose.msra.mxu0 0.0
    %304 = vmatprep.subr.mxu0 0.0
    %305 = vmatpush1.xpose.msra.mxu0 0.0
    %306 = vmatprep.subr.mxu0 0.0
    %307 = vmatpush1.xpose.msra.mxu0 0.0
    %308 = vmatprep.subr.mxu0 0.0
    %309 = vmatpush1.xpose.msra.mxu0 0.0
    %310 = vmatprep.subr.mxu0 0.0
    %311 = vmatpush1.xpose.msra.mxu0 0.0
    %312 = vmatprep.subr.mxu0 0.0
    %313 = vmatpush1.xpose.msra.mxu0 0.0
    %314 = vmatprep.subr.mxu0 0.0
    %315 = vmatpush1.xpose.msra.mxu0 0.0
    %316 = vmatprep.subr.mxu0 0.0
    %317 = vmatpush1.xpose.msra.mxu0 0.0
    %318 = vmatprep.subr.mxu0 0.0
    %319 = vmatpush1.xpose.msra.mxu0 0.0
    %320 = vmatprep.subr.mxu0 0.0
    %321 = vmatpush1.xpose.msra.mxu0 0.0
    %322 = vmatprep.subr.mxu0 0.0
    %323 = vmatpush1.xpose.msra.mxu0 0.0
    %324 = vmatprep.subr.mxu0 0.0
    %325 = vmatpush1.xpose.msra.mxu0 0.0
    %326 = vmatprep.subr.mxu0 0.0
    %327 = vmatpush1.xpose.msra.mxu0 0.0
    %328 = vmatprep.subr.mxu0 0.0
    %329 = vmatpush1.xpose.msra.mxu0 0.0
    %330 = vmatprep.subr.mxu0 0.0
    %331 = vmatpush1.xpose.msra.mxu0 0.0
    %332 = vmatprep.subr.mxu0 0.0
    %333 = vmatpush1.xpose.msra.mxu0 0.0
    %334 = vmatprep.subr.mxu0 0.0
    %335 = vmatpush1.xpose.msra.mxu0 0.0
    %336 = vmatprep.subr.mxu0 0.0
    %337 = vmatpush1.xpose.msra.mxu0 0.0
    %338 = vmatprep.subr.mxu0 0.0
    %339 = vmatpush1.xpose.msra.mxu0 0.0
    %340 = vmatprep.mubr.f32.mxu0 0.0
    %341 = vmatmul.mubr.f32.gmra.mrb[0].mxu0 %v250
    %v342 = vpop.f32.mrb[0].mxu0
    %v343 = vadd.f32 0.0, %v342
    %v344 = vpop.f32.mrb[0].mxu0
    %345 = vmatprep.mubr.f32.mxu0 0.0
    %346 = vmatmul.mubr.f32.gmra.mrb[0].mxu0 %v253
    %v347 = vpop.f32.mrb[0].mxu0
    %v348 = vadd.f32 0.0, %v347
    %v349 = vpop.f32.mrb[0].mxu0
    %350 = vmatprep.mubr.f32.mxu0 0.0
    %351 = vmatmul.mubr.f32.gmra.mrb[0].mxu0 %v256
    %v352 = vpop.f32.mrb[0].mxu0
    %v353 = vadd.f32 0.0, %v352
    %v354 = vpop.f32.mrb[0].mxu0
    %355 = vmatprep.mubr.f32.mxu0 0.0
    %356 = vmatmul.mubr.f32.gmra.mrb[0].mxu0 %v259
    %v357 = vpop.f32.mrb[0].mxu0
    %v358 = vadd.f32 0.0, %v357
    %v359 = vpop.f32.mrb[0].mxu0
    %360 = vmatprep.mubr.f32.mxu0 0.0
    %361 = vmatmul.mubr.f32.gmra.mrb[0].mxu0 %v262
    %v362 = vpop.f32.mrb[0].mxu0
    %v363 = vadd.f32 0.0, %v362
    %v364 = vpop.f32.mrb[0].mxu0
    %365 = vmatprep.mubr.f32.mxu0 0.0
    %366 = vmatmul.mubr.f32.gmra.mrb[0].mxu0 %v265
    %v367 = vpop.f32.mrb[0].mxu0
    %v368 = vadd.f32 0.0, %v367
    %v369 = vpop.f32.mrb[0].mxu0
    %370 = vmatprep.mubr.f32.mxu0 0.0
    %371 = vmatmul.mubr.f32.gmra.mrb[0].mxu0 %v268
    %v372 = vpop.f32.mrb[0].mxu0
    %v373 = vadd.f32 0.0, %v372
    %v374 = vpop.f32.mrb[0].mxu0
    %375 = vmatprep.mubr.f32.mxu0 0.0
    %376 = vmatmul.mubr.f32.gmra.mrb[0].mxu0 %v271
    %v377 = vpop.f32.mrb[0].mxu0
    %v378 = vadd.f32 0.0, %v377
    %v379 = vpop.f32.mrb[0].mxu0
    %380 = vdwg.mxu0
    %v381 = vadd.f32 %v231, %v343
    %v382 = vadd.f32 %v232, %v348
    %v383 = vadd.f32 %v233, %v353
    %v384 = vadd.f32 %v234, %v358
    %v385 = vadd.f32 %v235, %v363
    %v386 = vadd.f32 %v236, %v368
    %v387 = vadd.f32 %v237, %v373
    %v388 = vadd.f32 %v238, %v378
    %v389 = vld [vmem:[%s5] sm:$0xff]
    %v390 = vld [vmem:[%s5 + $0x8] sm:$0xff]
    %v391 = vld [vmem:[%s5 + $0x10] sm:$0xff]
    %v392 = vld [vmem:[%s5 + $0x18] sm:$0xff]
    %v393 = vld [vmem:[%s5 + $0x20] sm:$0xff]
    %v394 = vld [vmem:[%s5 + $0x28] sm:$0xff]
    %v395 = vld [vmem:[%s5 + $0x30] sm:$0xff]
    %v396 = vld [vmem:[%s5 + $0x38] sm:$0xff]
    %v397 = vld [vmem:[%s5 + $0x40] sm:$0xff]
    %v398 = vld [vmem:[%s5 + $0x48] sm:$0xff]
    %v399 = vld [vmem:[%s5 + $0x50] sm:$0xff]
    %v400 = vld [vmem:[%s5 + $0x58] sm:$0xff]
    %v401 = vld [vmem:[%s5 + $0x60] sm:$0xff]
    %v402 = vld [vmem:[%s5 + $0x68] sm:$0xff]
    %v403 = vld [vmem:[%s5 + $0x70] sm:$0xff]
    %v404 = vld [vmem:[%s5 + $0x78] sm:$0xff]
    %v405 = vld [vmem:[%s6] sm:$0xff]
    %v406 = vld [vmem:[%s6 + $0x8] sm:$0xff]
    %v407 = vld [vmem:[%s6 + $0x10] sm:$0xff]
    %v408 = vld [vmem:[%s6 + $0x18] sm:$0xff]
    %v409 = vld [vmem:[%s6 + $0x20] sm:$0xff]
    %v410 = vld [vmem:[%s6 + $0x28] sm:$0xff]
    %v411 = vld [vmem:[%s6 + $0x30] sm:$0xff]
    %v412 = vld [vmem:[%s6 + $0x38] sm:$0xff]
    %v413 = vld [vmem:[%s6 + $0x40] sm:$0xff]
    %v414 = vld [vmem:[%s6 + $0x48] sm:$0xff]
    %v415 = vld [vmem:[%s6 + $0x50] sm:$0xff]
    %v416 = vld [vmem:[%s6 + $0x58] sm:$0xff]
    %v417 = vld [vmem:[%s6 + $0x60] sm:$0xff]
    %v418 = vld [vmem:[%s6 + $0x68] sm:$0xff]
    %v419 = vld [vmem:[%s6 + $0x70] sm:$0xff]
    %v420 = vld [vmem:[%s6 + $0x78] sm:$0xff]
    %422 = vset.pattern.permute.xlu0 0
    %423 = vperm.xlu0 %422, %v405
    %v424 = vpop.permute.xlu0 %423
    %427 = vset.pattern.permute.xlu0 0
    %428 = vperm.xlu0 %427, %v406
    %v429 = vpop.permute.xlu0 %428
    %432 = vset.pattern.permute.xlu0 0
    %433 = vperm.xlu0 %432, %v407
    %v434 = vpop.permute.xlu0 %433
    %437 = vset.pattern.permute.xlu0 0
    %438 = vperm.xlu0 %437, %v408
    %v439 = vpop.permute.xlu0 %438
    %442 = vset.pattern.permute.xlu0 0
    %443 = vperm.xlu0 %442, %v409
    %v444 = vpop.permute.xlu0 %443
    %447 = vset.pattern.permute.xlu0 0
    %448 = vperm.xlu0 %447, %v410
    %v449 = vpop.permute.xlu0 %448
    %452 = vset.pattern.permute.xlu0 0
    %453 = vperm.xlu0 %452, %v411
    %v454 = vpop.permute.xlu0 %453
    %457 = vset.pattern.permute.xlu0 0
    %458 = vperm.xlu0 %457, %v412
    %v459 = vpop.permute.xlu0 %458
    %462 = vset.pattern.permute.xlu0 0
    %463 = vperm.xlu0 %462, %v413
    %v464 = vpop.permute.xlu0 %463
    %467 = vset.pattern.permute.xlu0 0
    %468 = vperm.xlu0 %467, %v414
    %v469 = vpop.permute.xlu0 %468
    %472 = vset.pattern.permute.xlu0 0
    %473 = vperm.xlu0 %472, %v415
    %v474 = vpop.permute.xlu0 %473
    %477 = vset.pattern.permute.xlu0 0
    %478 = vperm.xlu0 %477, %v416
    %v479 = vpop.permute.xlu0 %478
    %482 = vset.pattern.permute.xlu0 0
    %483 = vperm.xlu0 %482, %v417
    %v484 = vpop.permute.xlu0 %483
    %487 = vset.pattern.permute.xlu0 0
    %488 = vperm.xlu0 %487, %v418
    %v489 = vpop.permute.xlu0 %488
    %492 = vset.pattern.permute.xlu0 0
    %493 = vperm.xlu0 %492, %v419
    %v494 = vpop.permute.xlu0 %493
    %497 = vset.pattern.permute.xlu0 0
    %498 = vperm.xlu0 %497, %v420
    %v499 = vpop.permute.xlu0 %498
    %vm501 = vcmask 523264
    %v503 = vsel %vm501, %v389, 0
    %v506 = vsel %vm501, %v390, 0
    %v509 = vsel %vm501, %v391, 0
    %v512 = vsel %vm501, %v392, 0
    %v515 = vsel %vm501, %v393, 0
    %v518 = vsel %vm501, %v394, 0
    %v521 = vsel %vm501, %v395, 0
    %v524 = vsel %vm501, %v396, 0
    %v527 = vsel %vm501, %v397, 0
    %v530 = vsel %vm501, %v398, 0
    %v533 = vsel %vm501, %v399, 0
    %v536 = vsel %vm501, %v400, 0
    %v539 = vsel %vm501, %v401, 0
    %v542 = vsel %vm501, %v402, 0
    %v545 = vsel %vm501, %v403, 0
    %v548 = vsel %vm501, %v404, 0
    %550 = vmatprep.subr.mxu0 0.0
    %551 = vmatpush1.msra.mxu0 %v381
    %552 = vmatprep.subr.mxu0 0.0
    %553 = vmatpush1.msra.mxu0 %v382
    %554 = vmatprep.subr.mxu0 0.0
    %555 = vmatpush1.msra.mxu0 %v383
    %556 = vmatprep.subr.mxu0 0.0
    %557 = vmatpush1.msra.mxu0 %v384
    %558 = vmatprep.subr.mxu0 0.0
    %559 = vmatpush1.msra.mxu0 %v385
    %560 = vmatprep.subr.mxu0 0.0
    %561 = vmatpush1.msra.mxu0 %v386
    %562 = vmatprep.subr.mxu0 0.0
    %563 = vmatpush1.msra.mxu0 %v387
    %564 = vmatprep.subr.mxu0 0.0
    %565 = vmatpush1.msra.mxu0 %v388
    %566 = vmatprep.subr.mxu0 0.0
    %567 = vmatpush1.msra.mxu0 0.0
    %568 = vmatprep.subr.mxu0 0.0
    %569 = vmatpush1.msra.mxu0 0.0
    %570 = vmatprep.subr.mxu0 0.0
    %571 = vmatpush1.msra.mxu0 0.0
    %572 = vmatprep.subr.mxu0 0.0
    %573 = vmatpush1.msra.mxu0 0.0
    %574 = vmatprep.subr.mxu0 0.0
    %575 = vmatpush1.msra.mxu0 0.0
    %576 = vmatprep.subr.mxu0 0.0
    %577 = vmatpush1.msra.mxu0 0.0
    %578 = vmatprep.subr.mxu0 0.0
    %579 = vmatpush1.msra.mxu0 0.0
    %580 = vmatprep.subr.mxu0 0.0
    %581 = vmatpush1.msra.mxu0 0.0
    %582 = vmatprep.subr.mxu0 0.0
    %583 = vmatpush1.msra.mxu0 0.0
    %584 = vmatprep.subr.mxu0 0.0
    %585 = vmatpush1.msra.mxu0 0.0
    %586 = vmatprep.subr.mxu0 0.0
    %587 = vmatpush1.msra.mxu0 0.0
    %588 = vmatprep.subr.mxu0 0.0
    %589 = vmatpush1.msra.mxu0 0.0
    %590 = vmatprep.subr.mxu0 0.0
    %591 = vmatpush1.msra.mxu0 0.0
    %592 = vmatprep.subr.mxu0 0.0
    %593 = vmatpush1.msra.mxu0 0.0
    %594 = vmatprep.subr.mxu0 0.0
    %595 = vmatpush1.msra.mxu0 0.0
    %596 = vmatprep.subr.mxu0 0.0
    %597 = vmatpush1.msra.mxu0 0.0
    %598 = vmatprep.subr.mxu0 0.0
    %599 = vmatpush1.msra.mxu0 0.0
    %600 = vmatprep.subr.mxu0 0.0
    %601 = vmatpush1.msra.mxu0 0.0
    %602 = vmatprep.subr.mxu0 0.0
    %603 = vmatpush1.msra.mxu0 0.0
    %604 = vmatprep.subr.mxu0 0.0
    %605 = vmatpush1.msra.mxu0 0.0
    %606 = vmatprep.subr.mxu0 0.0
    %607 = vmatpush1.msra.mxu0 0.0
    %608 = vmatprep.subr.mxu0 0.0
    %609 = vmatpush1.msra.mxu0 0.0
    %610 = vmatprep.subr.mxu0 0.0
    %611 = vmatpush1.msra.mxu0 0.0
    %612 = vmatprep.subr.mxu0 0.0
    %613 = vmatpush1.msra.mxu0 0.0
    %614 = vmatprep.mubr.f32.mxu0 0.0
    %615 = vmatmul.mubr.f32.gmra.mrb[0].mxu0 %v503
    %v616 = vpop.f32.mrb[0].mxu0
    %v617 = vadd.f32 %v424, %v616
    %v618 = vpop.f32.mrb[0].mxu0
    %619 = vmatprep.mubr.f32.mxu0 0.0
    %620 = vmatmul.mubr.f32.gmra.mrb[0].mxu0 %v506
    %v621 = vpop.f32.mrb[0].mxu0
    %v622 = vadd.f32 %v429, %v621
    %v623 = vpop.f32.mrb[0].mxu0
    %624 = vmatprep.mubr.f32.mxu0 0.0
    %625 = vmatmul.mubr.f32.gmra.mrb[0].mxu0 %v509
    %v626 = vpop.f32.mrb[0].mxu0
    %v627 = vadd.f32 %v434, %v626
    %v628 = vpop.f32.mrb[0].mxu0
    %629 = vmatprep.mubr.f32.mxu0 0.0
    %630 = vmatmul.mubr.f32.gmra.mrb[0].mxu0 %v512
    %v631 = vpop.f32.mrb[0].mxu0
    %v632 = vadd.f32 %v439, %v631
    %v633 = vpop.f32.mrb[0].mxu0
    %634 = vmatprep.mubr.f32.mxu0 0.0
    %635 = vmatmul.mubr.f32.gmra.mrb[0].mxu0 %v515
    %v636 = vpop.f32.mrb[0].mxu0
    %v637 = vadd.f32 %v444, %v636
    %v638 = vpop.f32.mrb[0].mxu0
    %639 = vmatprep.mubr.f32.mxu0 0.0
    %640 = vmatmul.mubr.f32.gmra.mrb[0].mxu0 %v518
    %v641 = vpop.f32.mrb[0].mxu0
    %v642 = vadd.f32 %v449, %v641
    %v643 = vpop.f32.mrb[0].mxu0
    %644 = vmatprep.mubr.f32.mxu0 0.0
    %645 = vmatmul.mubr.f32.gmra.mrb[0].mxu0 %v521
    %v646 = vpop.f32.mrb[0].mxu0
    %v647 = vadd.f32 %v454, %v646
    %v648 = vpop.f32.mrb[0].mxu0
    %649 = vmatprep.mubr.f32.mxu0 0.0
    %650 = vmatmul.mubr.f32.gmra.mrb[0].mxu0 %v524
    %v651 = vpop.f32.mrb[0].mxu0
    %v652 = vadd.f32 %v459, %v651
    %v653 = vpop.f32.mrb[0].mxu0
    %654 = vmatprep.mubr.f32.mxu0 0.0
    %655 = vmatmul.mubr.f32.gmra.mrb[0].mxu0 %v527
    %v656 = vpop.f32.mrb[0].mxu0
    %v657 = vadd.f32 %v464, %v656
    %v658 = vpop.f32.mrb[0].mxu0
    %659 = vmatprep.mubr.f32.mxu0 0.0
    %660 = vmatmul.mubr.f32.gmra.mrb[0].mxu0 %v530
    %v661 = vpop.f32.mrb[0].mxu0
    %v662 = vadd.f32 %v469, %v661
    %v663 = vpop.f32.mrb[0].mxu0
    %664 = vmatprep.mubr.f32.mxu0 0.0
    %665 = vmatmul.mubr.f32.gmra.mrb[0].mxu0 %v533
    %v666 = vpop.f32.mrb[0].mxu0
    %v667 = vadd.f32 %v474, %v666
    %v668 = vpop.f32.mrb[0].mxu0
    %669 = vmatprep.mubr.f32.mxu0 0.0
    %670 = vmatmul.mubr.f32.gmra.mrb[0].mxu0 %v536
    %v671 = vpop.f32.mrb[0].mxu0
    %v672 = vadd.f32 %v479, %v671
    %v673 = vpop.f32.mrb[0].mxu0
    %674 = vmatprep.mubr.f32.mxu0 0.0
    %675 = vmatmul.mubr.f32.gmra.mrb[0].mxu0 %v539
    %v676 = vpop.f32.mrb[0].mxu0
    %v677 = vadd.f32 %v484, %v676
    %v678 = vpop.f32.mrb[0].mxu0
    %679 = vmatprep.mubr.f32.mxu0 0.0
    %680 = vmatmul.mubr.f32.gmra.mrb[0].mxu0 %v542
    %v681 = vpop.f32.mrb[0].mxu0
    %v682 = vadd.f32 %v489, %v681
    %v683 = vpop.f32.mrb[0].mxu0
    %684 = vmatprep.mubr.f32.mxu0 0.0
    %685 = vmatmul.mubr.f32.gmra.mrb[0].mxu0 %v545
    %v686 = vpop.f32.mrb[0].mxu0
    %v687 = vadd.f32 %v494, %v686
    %v688 = vpop.f32.mrb[0].mxu0
    %689 = vmatprep.mubr.f32.mxu0 0.0
    %690 = vmatmul.mubr.f32.gmra.mrb[0].mxu0 %v548
    %v691 = vpop.f32.mrb[0].mxu0
    %v692 = vadd.f32 %v499, %v691
    %v693 = vpop.f32.mrb[0].mxu0
    %694 = vdwg.mxu0
    %v695 = vmax.f32 %v617, 0.0
    %v696 = vmax.f32 %v622, 0.0
    %v697 = vmax.f32 %v627, 0.0
    %v698 = vmax.f32 %v632, 0.0
    %v699 = vmax.f32 %v637, 0.0
    %v700 = vmax.f32 %v642, 0.0
    %v701 = vmax.f32 %v647, 0.0
    %v702 = vmax.f32 %v652, 0.0
    %v703 = vmax.f32 %v657, 0.0
    %v704 = vmax.f32 %v662, 0.0
    %v705 = vmax.f32 %v667, 0.0
    %v706 = vmax.f32 %v672, 0.0
    %v707 = vmax.f32 %v677, 0.0
    %v708 = vmax.f32 %v682, 0.0
    %v709 = vmax.f32 %v687, 0.0
    %v710 = vmax.f32 %v692, 0.0
    %v711 = vld [vmem:[%s7] sm:$0xff]
    %v712 = vld [vmem:[%s7 + $0x8] sm:$0xff]
    %v713 = vld [vmem:[%s7 + $0x10] sm:$0xff]
    %v714 = vld [vmem:[%s7 + $0x18] sm:$0xff]
    %v715 = vld [vmem:[%s7 + $0x20] sm:$0xff]
    %v716 = vld [vmem:[%s7 + $0x28] sm:$0xff]
    %v717 = vld [vmem:[%s7 + $0x30] sm:$0xff]
    %v718 = vld [vmem:[%s7 + $0x38] sm:$0xff]
    %v719 = vld [vmem:[%s8] sm:$0xff]
    %v720 = vld [vmem:[%s8 + $0x8] sm:$0xff]
    %v721 = vld [vmem:[%s8 + $0x10] sm:$0xff]
    %v722 = vld [vmem:[%s8 + $0x18] sm:$0xff]
    %v723 = vld [vmem:[%s8 + $0x20] sm:$0xff]
    %v724 = vld [vmem:[%s8 + $0x28] sm:$0xff]
    %v725 = vld [vmem:[%s8 + $0x30] sm:$0xff]
    %v726 = vld [vmem:[%s8 + $0x38] sm:$0xff]
    %728 = vset.pattern.permute.xlu0 0
    %729 = vperm.xlu0 %728, %v719
    %v730 = vpop.permute.xlu0 %729
    %733 = vset.pattern.permute.xlu0 0
    %734 = vperm.xlu0 %733, %v720
    %v735 = vpop.permute.xlu0 %734
    %738 = vset.pattern.permute.xlu0 0
    %739 = vperm.xlu0 %738, %v721
    %v740 = vpop.permute.xlu0 %739
    %743 = vset.pattern.permute.xlu0 0
    %744 = vperm.xlu0 %743, %v722
    %v745 = vpop.permute.xlu0 %744
    %748 = vset.pattern.permute.xlu0 0
    %749 = vperm.xlu0 %748, %v723
    %v750 = vpop.permute.xlu0 %749
    %753 = vset.pattern.permute.xlu0 0
    %754 = vperm.xlu0 %753, %v724
    %v755 = vpop.permute.xlu0 %754
    %758 = vset.pattern.permute.xlu0 0
    %759 = vperm.xlu0 %758, %v725
    %v760 = vpop.permute.xlu0 %759
    %763 = vset.pattern.permute.xlu0 0
    %764 = vperm.xlu0 %763, %v726
    %v765 = vpop.permute.xlu0 %764
    %767 = vmatprep.subr.mxu0 0.0
    %768 = vmatpush1.msra.mxu0 %v695
    %769 = vmatprep.subr.mxu0 0.0
    %770 = vmatpush1.msra.mxu0 %v696
    %771 = vmatprep.subr.mxu0 0.0
    %772 = vmatpush1.msra.mxu0 %v697
    %773 = vmatprep.subr.mxu0 0.0
    %774 = vmatpush1.msra.mxu0 %v698
    %775 = vmatprep.subr.mxu0 0.0
    %776 = vmatpush1.msra.mxu0 %v699
    %777 = vmatprep.subr.mxu0 0.0
    %778 = vmatpush1.msra.mxu0 %v700
    %779 = vmatprep.subr.mxu0 0.0
    %780 = vmatpush1.msra.mxu0 %v701
    %781 = vmatprep.subr.mxu0 0.0
    %782 = vmatpush1.msra.mxu0 %v702
    %783 = vmatprep.subr.mxu0 0.0
    %784 = vmatpush1.msra.mxu0 %v703
    %785 = vmatprep.subr.mxu0 0.0
    %786 = vmatpush1.msra.mxu0 %v704
    %787 = vmatprep.subr.mxu0 0.0
    %788 = vmatpush1.msra.mxu0 %v705
    %789 = vmatprep.subr.mxu0 0.0
    %790 = vmatpush1.msra.mxu0 %v706
    %791 = vmatprep.subr.mxu0 0.0
    %792 = vmatpush1.msra.mxu0 %v707
    %793 = vmatprep.subr.mxu0 0.0
    %794 = vmatpush1.msra.mxu0 %v708
    %795 = vmatprep.subr.mxu0 0.0
    %796 = vmatpush1.msra.mxu0 %v709
    %797 = vmatprep.subr.mxu0 0.0
    %798 = vmatpush1.msra.mxu0 %v710
    %799 = vmatprep.subr.mxu0 0.0
    %800 = vmatpush1.msra.mxu0 0.0
    %801 = vmatprep.subr.mxu0 0.0
    %802 = vmatpush1.msra.mxu0 0.0
    %803 = vmatprep.subr.mxu0 0.0
    %804 = vmatpush1.msra.mxu0 0.0
    %805 = vmatprep.subr.mxu0 0.0
    %806 = vmatpush1.msra.mxu0 0.0
    %807 = vmatprep.subr.mxu0 0.0
    %808 = vmatpush1.msra.mxu0 0.0
    %809 = vmatprep.subr.mxu0 0.0
    %810 = vmatpush1.msra.mxu0 0.0
    %811 = vmatprep.subr.mxu0 0.0
    %812 = vmatpush1.msra.mxu0 0.0
    %813 = vmatprep.subr.mxu0 0.0
    %814 = vmatpush1.msra.mxu0 0.0
    %815 = vmatprep.subr.mxu0 0.0
    %816 = vmatpush1.msra.mxu0 0.0
    %817 = vmatprep.subr.mxu0 0.0
    %818 = vmatpush1.msra.mxu0 0.0
    %819 = vmatprep.subr.mxu0 0.0
    %820 = vmatpush1.msra.mxu0 0.0
    %821 = vmatprep.subr.mxu0 0.0
    %822 = vmatpush1.msra.mxu0 0.0
    %823 = vmatprep.subr.mxu0 0.0
    %824 = vmatpush1.msra.mxu0 0.0
    %825 = vmatprep.subr.mxu0 0.0
    %826 = vmatpush1.msra.mxu0 0.0
    %827 = vmatprep.subr.mxu0 0.0
    %828 = vmatpush1.msra.mxu0 0.0
    %829 = vmatprep.subr.mxu0 0.0
    %830 = vmatpush1.msra.mxu0 0.0
    %831 = vmatprep.mubr.f32.mxu0 0.0
    %832 = vmatmul.mubr.f32.gmra.mrb[0].mxu0 %v711
    %v833 = vpop.f32.mrb[0].mxu0
    %v834 = vadd.f32 %v730, %v833
    %v835 = vpop.f32.mrb[0].mxu0
    %836 = vmatprep.mubr.f32.mxu0 0.0
    %837 = vmatmul.mubr.f32.gmra.mrb[0].mxu0 %v712
    %v838 = vpop.f32.mrb[0].mxu0
    %v839 = vadd.f32 %v735, %v838
    %v840 = vpop.f32.mrb[0].mxu0
    %841 = vmatprep.mubr.f32.mxu0 0.0
    %842 = vmatmul.mubr.f32.gmra.mrb[0].mxu0 %v713
    %v843 = vpop.f32.mrb[0].mxu0
    %v844 = vadd.f32 %v740, %v843
    %v845 = vpop.f32.mrb[0].mxu0
    %846 = vmatprep.mubr.f32.mxu0 0.0
    %847 = vmatmul.mubr.f32.gmra.mrb[0].mxu0 %v714
    %v848 = vpop.f32.mrb[0].mxu0
    %v849 = vadd.f32 %v745, %v848
    %v850 = vpop.f32.mrb[0].mxu0
    %851 = vmatprep.mubr.f32.mxu0 0.0
    %852 = vmatmul.mubr.f32.gmra.mrb[0].mxu0 %v715
    %v853 = vpop.f32.mrb[0].mxu0
    %v854 = vadd.f32 %v750, %v853
    %v855 = vpop.f32.mrb[0].mxu0
    %856 = vmatprep.mubr.f32.mxu0 0.0
    %857 = vmatmul.mubr.f32.gmra.mrb[0].mxu0 %v716
    %v858 = vpop.f32.mrb[0].mxu0
    %v859 = vadd.f32 %v755, %v858
    %v860 = vpop.f32.mrb[0].mxu0
    %861 = vmatprep.mubr.f32.mxu0 0.0
    %862 = vmatmul.mubr.f32.gmra.mrb[0].mxu0 %v717
    %v863 = vpop.f32.mrb[0].mxu0
    %v864 = vadd.f32 %v760, %v863
    %v865 = vpop.f32.mrb[0].mxu0
    %866 = vmatprep.mubr.f32.mxu0 0.0
    %867 = vmatmul.mubr.f32.gmra.mrb[0].mxu0 %v718
    %v868 = vpop.f32.mrb[0].mxu0
    %v869 = vadd.f32 %v765, %v868
    %v870 = vpop.f32.mrb[0].mxu0
    %871 = vdwg.mxu0
    %v872 = vmax.f32 %v834, 0.0
    %v873 = vmax.f32 %v839, 0.0
    %v874 = vmax.f32 %v844, 0.0
    %v875 = vmax.f32 %v849, 0.0
    %v876 = vmax.f32 %v854, 0.0
    %v877 = vmax.f32 %v859, 0.0
    %v878 = vmax.f32 %v864, 0.0
    %v879 = vmax.f32 %v869, 0.0
    %v880 = vld [vmem:[%s9] sm:$0xff]
    %v881 = vld [vmem:[%s9 + $0x8] sm:$0xff]
    %v882 = vld [vmem:[%s9 + $0x10] sm:$0xff]
    %v883 = vld [vmem:[%s9 + $0x18] sm:$0xff]
    %v884 = vld [vmem:[%s9 + $0x20] sm:$0xff]
    %v885 = vld [vmem:[%s9 + $0x28] sm:$0xff]
    %v886 = vld [vmem:[%s9 + $0x30] sm:$0xff]
    %v887 = vld [vmem:[%s9 + $0x38] sm:$0xff]
    %889 = vset.pattern.permute.xlu0 0
    %890 = vperm.xlu0 %889, %v880
    %v891 = vpop.permute.xlu0 %890
    %894 = vset.pattern.permute.xlu0 0
    %895 = vperm.xlu0 %894, %v881
    %v896 = vpop.permute.xlu0 %895
    %899 = vset.pattern.permute.xlu0 0
    %900 = vperm.xlu0 %899, %v882
    %v901 = vpop.permute.xlu0 %900
    %904 = vset.pattern.permute.xlu0 0
    %905 = vperm.xlu0 %904, %v883
    %v906 = vpop.permute.xlu0 %905
    %909 = vset.pattern.permute.xlu0 0
    %910 = vperm.xlu0 %909, %v884
    %v911 = vpop.permute.xlu0 %910
    %914 = vset.pattern.permute.xlu0 0
    %915 = vperm.xlu0 %914, %v885
    %v916 = vpop.permute.xlu0 %915
    %919 = vset.pattern.permute.xlu0 0
    %920 = vperm.xlu0 %919, %v886
    %v921 = vpop.permute.xlu0 %920
    %924 = vset.pattern.permute.xlu0 0
    %925 = vperm.xlu0 %924, %v887
    %v926 = vpop.permute.xlu0 %925
    %v928 = vmul.f32 %v872, %v891
    %v929 = vmul.f32 %v873, %v896
    %v930 = vmul.f32 %v874, %v901
    %v931 = vmul.f32 %v875, %v906
    %v932 = vmul.f32 %v876, %v911
    %v933 = vmul.f32 %v877, %v916
    %v934 = vmul.f32 %v878, %v921
    %v935 = vmul.f32 %v879, %v926
    %vm936 = vcmask 15360
    %v937 = vsel %vm936, %v928, 0.0
    %v938 = vsel %vm936, %v929, 0.0
    %v939 = vadd.f32 %v937, %v938
    %v940 = vsel %vm936, %v930, 0.0
    %v941 = vadd.f32 %v939, %v940
    %v942 = vsel %vm936, %v931, 0.0
    %v943 = vadd.f32 %v941, %v942
    %v944 = vsel %vm936, %v932, 0.0
    %v945 = vadd.f32 %v943, %v944
    %v946 = vsel %vm936, %v933, 0.0
    %v947 = vadd.f32 %v945, %v946
    %v948 = vsel %vm936, %v934, 0.0
    %v949 = vadd.f32 %v947, %v948
    %v950 = vsel %vm936, %v935, 0.0
    %v951 = vadd.f32 %v949, %v950
    %v952 = vrot.slane %v951, 4
    %v953 = vadd.f32 %v951, %v952
    %v954 = vrot.slane %v953, 2
    %v955 = vadd.f32 %v953, %v954
    %v956 = vrot.slane %v955, 1
    %v957 = vadd.f32 %v955, %v956
    %v958 = vld [vmem:[#allocation2] sm:$0x1]
    %960 = vset.pattern.permute.xlu0 0
    %961 = vperm.xlu0 %960, %v958
    %v962 = vpop.permute.xlu0 %961
    %v964 = vlaneseq
    %v965 = vshrl.u32 %v964, 7
    %v966 = vsub.s32 0, %v965
    %v967 = vrot.slane %v962, %v966
    %v968 = vadd.f32 %v957, %v967
    %vm969 = vcmask 8192
    %970 = vst.msk [vmem:[#allocation3] sm:$0x1] %vm969, %v968
    // Predicated region
    $region46: #{critic_forward.1} parent=1 // pred_check
      _
    $region47: #{critic_forward.1} parent=1 // pred_check_branch
      %972 = sbr.rel (0) target = $region49
    $region48: #{critic_forward.1} parent=1 // pred_region
      %s974 = ssub.s32 16, 16
      %975 = vsyncadd [#allocation4], %s974
      %s977 = sshll.u32 [#allocation3], 4
      %s978 = int_to_ptr.vmem [resolvable:$true] %s977
      %980 = dma.vmem_to_hbm [thread:$0]  %s978, 16, %s11, [#allocation4]
    $region49: #{critic_forward.1} parent=1 // pred_fallthru
      _
    // Predicated region
    $region50: #{critic_forward.1} parent=1 // pred_check
      _
    $region51: #{critic_forward.1} parent=1 // pred_check_branch
      %982 = sbr.rel (0) target = $region53
    $region52: #{critic_forward.1} parent=1 // pred_region
      %983 = dma.done [#allocation4], 16
    $region53: #{critic_forward.1} parent=1 // pred_fallthru
      _
    %984 = vsyncpa [#allocation4], 1

</llo_original>
